<compile_context>
chip_gen: v7x
topology: tpu7x:2x2x1
jax: 0.10.0
libtpu: 0.0.40
codegen_flags: <defaults>
</compile_context>

<pallas_src>
import jax
import jax.numpy as jnp
from jax.experimental import pallas as pl
from jax.experimental.pallas import tpu as pltpu

_LANE = 128


def _round_up(x, m):
    return ((x + m - 1) // m) * m


def mlp_kernel(x_ref, w1_ref, b1_ref, w2_ref, b2_ref, w3_ref, b3_ref, o_ref):
    # Layer 1: Linear + ReLU
    h1 = jnp.dot(x_ref[...], w1_ref[...], preferred_element_type=jnp.float32)
    h1 = jnp.maximum(h1 + b1_ref[...], 0.0)
    # Layer 2: Linear + ReLU
    h2 = jnp.dot(h1.astype(w2_ref.dtype), w2_ref[...],
                 preferred_element_type=jnp.float32)
    h2 = jnp.maximum(h2 + b2_ref[...], 0.0)
    # Layer 3 (final): Linear, no activation (final_activation=False).
    # w3/b3 may be lane-padded to a multiple of 128 (zero columns), so this
    # store is lane-dense (unmasked vst); the wrapper slices the real D_out.
    out = jnp.dot(h2.astype(w3_ref.dtype), w3_ref[...],
                  preferred_element_type=jnp.float32)
    out = out + b3_ref[...]
    o_ref[...] = out.astype(o_ref.dtype)


def mlp_forward(x, params, *, tile_b=512, pad_output_lanes=True):
    """x: (B, input_size) float32. params: dict of w1,b1,w2,b2,w3,b3."""
    B, D_in = x.shape
    H = params["w1"].shape[1]
    D_out = params["w3"].shape[1]

    # --- Batch tiling ------------------------------------------------------
    # Use big, sublane-aligned batch tiles (default 512 rows ~ only a few
    # hundred KiB of VMEM at these widths), but never larger than needed for
    # the actual batch. Ragged trailing tiles are handled by Pallas' masked
    # writeback.
    tb = min(tile_b, _round_up(B, 8))
    tb = max(8, _round_up(tb, 8))
    grid = (pl.cdiv(B, tb),)

    # --- Lane-dense output layer -------------------------------------------
    # Zero-pad the last layer's N dim to a multiple of 128 so every output
    # store is a full-lane vst. Extra columns compute zeros and are sliced
    # off in the wrapper.
    if pad_output_lanes and (D_out % _LANE != 0):
        n_pad = _round_up(D_out, _LANE)
        w3 = jnp.pad(params["w3"], ((0, 0), (0, n_pad - D_out)))
        b3 = jnp.pad(params["b3"], ((0, 0), (0, n_pad - D_out)))
    else:
        n_pad = D_out
        w3 = params["w3"]
        b3 = params["b3"]

    # Weights/biases are grid-invariant (constant index_map) -> resident in VMEM.
    wspec = lambda shape: pl.BlockSpec(shape, lambda i: (0, 0))

    out_padded = pl.pallas_call(
        mlp_kernel,
        out_shape=jax.ShapeDtypeStruct((B, n_pad), x.dtype),
        grid=grid,
        in_specs=[
            pl.BlockSpec((tb, D_in), lambda i: (i, 0)),   # x tile over batch
            wspec((D_in, H)),                             # w1
            wspec((1, H)),                                # b1
            wspec((H, D_out)),                            # w2
            wspec((1, D_out)),                            # b2
            wspec((D_out, n_pad)),                        # w3 (lane-padded)
            wspec((1, n_pad)),                            # b3 (lane-padded)
        ],
        out_specs=pl.BlockSpec((tb, n_pad), lambda i: (i, 0)),
        compiler_params=pltpu.CompilerParams(
            dimension_semantics=("parallel",),            # batch axis shards across TCs
            vmem_limit_bytes=32 * 1024 * 1024,            # explicit: safe on v5e/v6e/v7x
        ),
    )(x, params["w1"], params["b1"], params["w2"], params["b2"], w3, b3)

    if n_pad != D_out:
        return out_padded[:, :D_out]
    return out_padded


def init_params(key, input_size, output_size, reduction_ratio=0.5):
    # Mirror the default construction: hidden_dims = [int(input*0.5)] clamped to >= output
    hidden = max(output_size, int(input_size * reduction_ratio))
    k1, k2, k3, k4, k5, k6 = jax.random.split(key, 6)

    def uniform_init(k, fan_in, shape):
        # torch.nn.Linear default init: U(-1/sqrt(fan_in), 1/sqrt(fan_in))
        bound = 1.0 / jnp.sqrt(fan_in)
        return jax.random.uniform(k, shape, jnp.float32, -bound, bound)

    return {
        "w1": uniform_init(k1, input_size, (input_size, hidden)),
        "b1": uniform_init(k2, input_size, (1, hidden)),
        "w2": uniform_init(k3, hidden, (hidden, output_size)),
        "b2": uniform_init(k4, hidden, (1, output_size)),
        "w3": uniform_init(k5, output_size, (output_size, output_size)),
        "b3": uniform_init(k6, output_size, (1, output_size)),
    }


def mlp_reference(x, p):
    h1 = jnp.maximum(x @ p["w1"] + p["b1"], 0.0)
    h2 = jnp.maximum(h1 @ p["w2"] + p["b2"], 0.0)
    return h2 @ p["w3"] + p["b3"]


if __name__ == "__main__":
    key = jax.random.PRNGKey(0)
    kx, kp = jax.random.split(key)

    B, INPUT_SIZE, OUTPUT_SIZE = 16, 32, 8
    x = jax.random.normal(kx, (B, INPUT_SIZE), dtype=jnp.float32)
    params = init_params(kp, INPUT_SIZE, OUTPUT_SIZE)

    out = mlp_forward(x, params)          # tile_b auto-clamps to the small batch
    out = jax.block_until_ready(out)

    ref = mlp_reference(x, params)
    assert out.shape == (B, OUTPUT_SIZE)
    assert jnp.allclose(out, ref, atol=1e-5, rtol=1e-5), "mismatch vs reference"

    print("KERNEL_OK")
</pallas_src>

<mosaic_0001>
module attributes {stable_mosaic.version = 11 : i64} {
  func.func @mlp_kernel(%arg0: i32, %arg1: memref<16x32xf32, #tpu.memory_space<vmem>>, %arg2: memref<32x16xf32, #tpu.memory_space<vmem>>, %arg3: memref<1x16xf32, #tpu.memory_space<vmem>>, %arg4: memref<16x8xf32, #tpu.memory_space<vmem>>, %arg5: memref<1x8xf32, #tpu.memory_space<vmem>>, %arg6: memref<8x128xf32, #tpu.memory_space<vmem>>, %arg7: memref<1x128xf32, #tpu.memory_space<vmem>>, %arg8: memref<16x128xf32, #tpu.memory_space<vmem>>) attributes {dimension_semantics = [#tpu.dimension_semantics<parallel>], iteration_bounds = array<i64: 1>, scalar_prefetch = 0 : i64, scratch_operands = 0 : i64, tpu.core_type = #tpu.core_type<tc>, window_params = [{transform_indices = @transform_0, window_bounds = array<i64: 16, 32>}, {pipeline_mode = #tpu.pipeline_mode<synchronous>, transform_indices = @transform_1, window_bounds = array<i64: 32, 16>}, {pipeline_mode = #tpu.pipeline_mode<synchronous>, transform_indices = @transform_2, window_bounds = array<i64: 1, 16>}, {pipeline_mode = #tpu.pipeline_mode<synchronous>, transform_indices = @transform_3, window_bounds = array<i64: 16, 8>}, {pipeline_mode = #tpu.pipeline_mode<synchronous>, transform_indices = @transform_4, window_bounds = array<i64: 1, 8>}, {pipeline_mode = #tpu.pipeline_mode<synchronous>, transform_indices = @transform_5, window_bounds = array<i64: 8, 128>}, {pipeline_mode = #tpu.pipeline_mode<synchronous>, transform_indices = @transform_6, window_bounds = array<i64: 1, 128>}, {transform_indices = @transform_7, window_bounds = array<i64: 16, 128>}]} {
    %c0 = arith.constant 0 : index
    %c0_0 = arith.constant 0 : index
    %0 = vector.load %arg1[%c0, %c0_0] : memref<16x32xf32, #tpu.memory_space<vmem>>, vector<16x32xf32>
    %c0_1 = arith.constant 0 : index
    %c0_2 = arith.constant 0 : index
    %1 = vector.load %arg2[%c0_1, %c0_2] : memref<32x16xf32, #tpu.memory_space<vmem>>, vector<32x16xf32>
    %cst = arith.constant dense<0.000000e+00> : vector<16x16xf32>
    %2 = tpu.matmul %0, %1, %cst {dimension_numbers = #tpu.dot_dimension_numbers<[1], [0], [0], [1], [0, 0, 1, 1], [], []>} : vector<16x32xf32>, vector<32x16xf32>, vector<16x16xf32> -> vector<16x16xf32>
    %c0_3 = arith.constant 0 : index
    %c0_4 = arith.constant 0 : index
    %3 = vector.load %arg3[%c0_3, %c0_4] : memref<1x16xf32, #tpu.memory_space<vmem>>, vector<1x16xf32>
    %4 = vector.broadcast %3 : vector<1x16xf32> to vector<16x16xf32>
    %5 = arith.addf %2, %4 : vector<16x16xf32>
    %cst_5 = arith.constant 0.000000e+00 : f32
    %6 = vector.broadcast %cst_5 : f32 to vector<16x16xf32>
    %7 = arith.maximumf %5, %6 : vector<16x16xf32>
    %c0_6 = arith.constant 0 : index
    %c0_7 = arith.constant 0 : index
    %8 = vector.load %arg4[%c0_6, %c0_7] : memref<16x8xf32, #tpu.memory_space<vmem>>, vector<16x8xf32>
    %cst_8 = arith.constant dense<0.000000e+00> : vector<16x8xf32>
    %9 = tpu.matmul %7, %8, %cst_8 {dimension_numbers = #tpu.dot_dimension_numbers<[1], [0], [0], [1], [0, 0, 1, 1], [], []>} : vector<16x16xf32>, vector<16x8xf32>, vector<16x8xf32> -> vector<16x8xf32>
    %c0_9 = arith.constant 0 : index
    %c0_10 = arith.constant 0 : index
    %10 = vector.load %arg5[%c0_9, %c0_10] : memref<1x8xf32, #tpu.memory_space<vmem>>, vector<1x8xf32>
    %11 = vector.broadcast %10 : vector<1x8xf32> to vector<16x8xf32>
    %12 = arith.addf %9, %11 : vector<16x8xf32>
    %cst_11 = arith.constant 0.000000e+00 : f32
    %13 = vector.broadcast %cst_11 : f32 to vector<16x8xf32>
    %14 = arith.maximumf %12, %13 : vector<16x8xf32>
    %c0_12 = arith.constant 0 : index
    %c0_13 = arith.constant 0 : index
    %15 = vector.load %arg6[%c0_12, %c0_13] : memref<8x128xf32, #tpu.memory_space<vmem>>, vector<8x128xf32>
    %cst_14 = arith.constant dense<0.000000e+00> : vector<16x128xf32>
    %16 = tpu.matmul %14, %15, %cst_14 {dimension_numbers = #tpu.dot_dimension_numbers<[1], [0], [0], [1], [0, 0, 1, 1], [], []>} : vector<16x8xf32>, vector<8x128xf32>, vector<16x128xf32> -> vector<16x128xf32>
    %c0_15 = arith.constant 0 : index
    %c0_16 = arith.constant 0 : index
    %17 = vector.load %arg7[%c0_15, %c0_16] : memref<1x128xf32, #tpu.memory_space<vmem>>, vector<1x128xf32>
    %18 = vector.broadcast %17 : vector<1x128xf32> to vector<16x128xf32>
    %19 = arith.addf %16, %18 : vector<16x128xf32>
    %c0_17 = arith.constant 0 : index
    %c0_18 = arith.constant 0 : index
    %20 = vector.load %arg8[%c0_17, %c0_18] : memref<16x128xf32, #tpu.memory_space<vmem>>, vector<16x128xf32>
    tpu.vector_store %arg8[%c0_17, %c0_18], %19 {strides = array<i32>} : memref<16x128xf32, #tpu.memory_space<vmem>>, vector<16x128xf32>,
    return
  }
  func.func @transform_0(%arg0: i32) -> (i32, i32) {
    %c0_i32 = arith.constant 0 : i32
    %c0_i32_0 = arith.constant 0 : i32
    return %arg0, %c0_i32 : i32, i32
  }
  func.func @transform_1(%arg0: i32) -> (i32, i32) {
    %c0_i32 = arith.constant 0 : i32
    %c0_i32_0 = arith.constant 0 : i32
    %c0_i32_1 = arith.constant 0 : i32
    return %c0_i32, %c0_i32_0 : i32, i32
  }
  func.func @transform_2(%arg0: i32) -> (i32, i32) {
    %c0_i32 = arith.constant 0 : i32
    %c0_i32_0 = arith.constant 0 : i32
    %c0_i32_1 = arith.constant 0 : i32
    return %c0_i32, %c0_i32_0 : i32, i32
  }
  func.func @transform_3(%arg0: i32) -> (i32, i32) {
    %c0_i32 = arith.constant 0 : i32
    %c0_i32_0 = arith.constant 0 : i32
    %c0_i32_1 = arith.constant 0 : i32
    return %c0_i32, %c0_i32_0 : i32, i32
  }
  func.func @transform_4(%arg0: i32) -> (i32, i32) {
    %c0_i32 = arith.constant 0 : i32
    %c0_i32_0 = arith.constant 0 : i32
    %c0_i32_1 = arith.constant 0 : i32
    return %c0_i32, %c0_i32_0 : i32, i32
  }
  func.func @transform_5(%arg0: i32) -> (i32, i32) {
    %c0_i32 = arith.constant 0 : i32
    %c0_i32_0 = arith.constant 0 : i32
    %c0_i32_1 = arith.constant 0 : i32
    return %c0_i32, %c0_i32_0 : i32, i32
  }
  func.func @transform_6(%arg0: i32) -> (i32, i32) {
    %c0_i32 = arith.constant 0 : i32
    %c0_i32_0 = arith.constant 0 : i32
    %c0_i32_1 = arith.constant 0 : i32
    return %c0_i32, %c0_i32_0 : i32, i32
  }
  func.func @transform_7(%arg0: i32) -> (i32, i32) {
    %c0_i32 = arith.constant 0 : i32
    %c0_i32_0 = arith.constant 0 : i32
    return %arg0, %c0_i32 : i32, i32
  }
}

</mosaic_0001>

<llo_original>
// kernel: tpu_custom_call.1
$region0: #{tpu_custom_call.1}
  #allocation0 [shape = 'u32[]', space=smem, size = 0x4, offset = 0x4, fixed_abs, tag = 'smem constant byte address 0x4 - core index']
  #allocation1 [shape = 'u32[144,128]{1,0:T(1,128)}', space=vmem, size = 0x12000, scoped, tag = 'internal scratch']
  %s0 = inlined_call_operand.vmem [shape: f32[16,32], index: 0, kind: input, shape index: {}]
  %s1 = inlined_call_operand.vmem [shape: f32[32,16], index: 1, kind: input, shape index: {}]
  %s2 = inlined_call_operand.vmem [shape: f32[1,16], index: 2, kind: input, shape index: {}]
  %s3 = inlined_call_operand.vmem [shape: f32[16,8], index: 3, kind: input, shape index: {}]
  %s4 = inlined_call_operand.vmem [shape: f32[1,8], index: 4, kind: input, shape index: {}]
  %s5 = inlined_call_operand.vmem [shape: f32[8,128], index: 5, kind: input, shape index: {}]
  %s6 = inlined_call_operand.vmem [shape: f32[1,128], index: 6, kind: input, shape index: {}]
  %s7 = inlined_call_operand.hbm [shape: f32[16,128], index: 7, kind: output, shape index: {}]
  %s8 = sld [smem:[#allocation0]]
  $region38: #{tpu_custom_call.1} parent=0
    _
  %s10 = ssub.s32 1, %s8
  %s11 = scalar_select 0, %s10, %s8
  $region1: #{tpu_custom_call.1} parent=0
    #allocation2 [shape = 'u8[8192]{0}', space=vmem, size = 0x2000, scoped, tag = 'output window, operand 0, single buffered']
    #allocation3 [shape = 's32[1]{0}', space=sflag, size = 0x4, scoped, tag = 'scoped memory for tpu_custom_call.1']
    %12 = vsyncpa [#allocation3], 0
    // Predicated region
    $region2: #{tpu_custom_call.1} parent=1 // pred_check
      _
    $region3: #{tpu_custom_call.1} parent=1 // pred_check_branch
      %14 = sbr.rel (0) target = $region5
    $region4: #{tpu_custom_call.1} parent=1 // pred_region
      _
    $region5: #{tpu_custom_call.1} parent=1 // pred_fallthru
      _
    // Predicated region
    $region6: #{tpu_custom_call.1} parent=1 // pred_check
      _
    $region7: #{tpu_custom_call.1} parent=1 // pred_check_branch
      %16 = sbr.rel (0) target = $region9
    $region8: #{tpu_custom_call.1} parent=1 // pred_region
      _
    $region9: #{tpu_custom_call.1} parent=1 // pred_fallthru
      _
    // Predicated region
    $region10: #{tpu_custom_call.1} parent=1 // pred_check
      _
    $region11: #{tpu_custom_call.1} parent=1 // pred_check_branch
      %18 = sbr.rel (0) target = $region13
    $region12: #{tpu_custom_call.1} parent=1 // pred_region
      _
    $region13: #{tpu_custom_call.1} parent=1 // pred_fallthru
      _
    // Predicated region
    $region14: #{tpu_custom_call.1} parent=1 // pred_check
      _
    $region15: #{tpu_custom_call.1} parent=1 // pred_check_branch
      %20 = sbr.rel (0) target = $region17
    $region16: #{tpu_custom_call.1} parent=1 // pred_region
      _
    $region17: #{tpu_custom_call.1} parent=1 // pred_fallthru
      _
    // Predicated region
    $region18: #{tpu_custom_call.1} parent=1 // pred_check
      _
    $region19: #{tpu_custom_call.1} parent=1 // pred_check_branch
      %22 = sbr.rel (0) target = $region21
    $region20: #{tpu_custom_call.1} parent=1 // pred_region
      _
    $region21: #{tpu_custom_call.1} parent=1 // pred_fallthru
      _
    // Predicated region
    $region22: #{tpu_custom_call.1} parent=1 // pred_check
      _
    $region23: #{tpu_custom_call.1} parent=1 // pred_check_branch
      %24 = sbr.rel (0) target = $region25
    $region24: #{tpu_custom_call.1} parent=1 // pred_region
      _
    $region25: #{tpu_custom_call.1} parent=1 // pred_fallthru
      _
    // Predicated region
    $region26: #{tpu_custom_call.1} parent=1 // pred_check
      _
    $region27: #{tpu_custom_call.1} parent=1 // pred_check_branch
      %26 = sbr.rel (0) target = $region29
    $region28: #{tpu_custom_call.1} parent=1 // pred_region
      _
    $region29: #{tpu_custom_call.1} parent=1 // pred_fallthru
      _
    %v27 = vld [vmem:[%s0] sm:$0xff]
    %v28 = vld [vmem:[%s0 + $0x8] sm:$0xff]
    %v29 = vld [vmem:[%s1] sm:$0xff]
    %v30 = vld [vmem:[%s1 + $0x8] sm:$0xff]
    %v31 = vld [vmem:[%s1 + $0x10] sm:$0xff]
    %v32 = vld [vmem:[%s1 + $0x18] sm:$0xff]
    %v33 = vld [vmem:[%s2] sm:$0x1]
    %v35 = vlaneseq
    %v36 = vshrl.u32 %v35, 7
    %v37 = vsub.s32 0, %v36
    %v38 = vrot.slane %v33, %v37
    %vm40 = vcmask 261120
    %v42 = vsel %vm40, %v27, 0
    %v45 = vsel %vm40, %v28, 0
    %47 = vmatprep.subr.mxu0 0.0
    %48 = vmatpush1.msra.mxu0 %v29
    %49 = vmatprep.subr.mxu0 0.0
    %50 = vmatpush1.msra.mxu0 %v30
    %51 = vmatprep.subr.mxu0 0.0
    %52 = vmatpush1.msra.mxu0 %v31
    %53 = vmatprep.subr.mxu0 0.0
    %54 = vmatpush1.msra.mxu0 %v32
    %55 = vmatprep.subr.mxu0 0.0
    %56 = vmatpush1.msra.mxu0 0.0
    %57 = vmatprep.subr.mxu0 0.0
    %58 = vmatpush1.msra.mxu0 0.0
    %59 = vmatprep.subr.mxu0 0.0
    %60 = vmatpush1.msra.mxu0 0.0
    %61 = vmatprep.subr.mxu0 0.0
    %62 = vmatpush1.msra.mxu0 0.0
    %63 = vmatprep.subr.mxu0 0.0
    %64 = vmatpush1.msra.mxu0 0.0
    %65 = vmatprep.subr.mxu0 0.0
    %66 = vmatpush1.msra.mxu0 0.0
    %67 = vmatprep.subr.mxu0 0.0
    %68 = vmatpush1.msra.mxu0 0.0
    %69 = vmatprep.subr.mxu0 0.0
    %70 = vmatpush1.msra.mxu0 0.0
    %71 = vmatprep.subr.mxu0 0.0
    %72 = vmatpush1.msra.mxu0 0.0
    %73 = vmatprep.subr.mxu0 0.0
    %74 = vmatpush1.msra.mxu0 0.0
    %75 = vmatprep.subr.mxu0 0.0
    %76 = vmatpush1.msra.mxu0 0.0
    %77 = vmatprep.subr.mxu0 0.0
    %78 = vmatpush1.msra.mxu0 0.0
    %79 = vmatprep.subr.mxu0 0.0
    %80 = vmatpush1.msra.mxu0 0.0
    %81 = vmatprep.subr.mxu0 0.0
    %82 = vmatpush1.msra.mxu0 0.0
    %83 = vmatprep.subr.mxu0 0.0
    %84 = vmatpush1.msra.mxu0 0.0
    %85 = vmatprep.subr.mxu0 0.0
    %86 = vmatpush1.msra.mxu0 0.0
    %87 = vmatprep.subr.mxu0 0.0
    %88 = vmatpush1.msra.mxu0 0.0
    %89 = vmatprep.subr.mxu0 0.0
    %90 = vmatpush1.msra.mxu0 0.0
    %91 = vmatprep.subr.mxu0 0.0
    %92 = vmatpush1.msra.mxu0 0.0
    %93 = vmatprep.subr.mxu0 0.0
    %94 = vmatpush1.msra.mxu0 0.0
    %95 = vmatprep.subr.mxu0 0.0
    %96 = vmatpush1.msra.mxu0 0.0
    %97 = vmatprep.subr.mxu0 0.0
    %98 = vmatpush1.msra.mxu0 0.0
    %99 = vmatprep.subr.mxu0 0.0
    %100 = vmatpush1.msra.mxu0 0.0
    %101 = vmatprep.subr.mxu0 0.0
    %102 = vmatpush1.msra.mxu0 0.0
    %103 = vmatprep.subr.mxu0 0.0
    %104 = vmatpush1.msra.mxu0 0.0
    %105 = vmatprep.subr.mxu0 0.0
    %106 = vmatpush1.msra.mxu0 0.0
    %107 = vmatprep.subr.mxu0 0.0
    %108 = vmatpush1.msra.mxu0 0.0
    %109 = vmatprep.subr.mxu0 0.0
    %110 = vmatpush1.msra.mxu0 0.0
    %111 = vmatprep.mubr.f32.mxu0 0.0
    %112 = vmatmul.mubr.f32.gmra.mrb[0].mxu0 %v42
    %v113 = vpop.f32.mrb[0].mxu0
    %v114 = vadd.f32 %v38, %v113
    %v115 = vpop.f32.mrb[0].mxu0
    %116 = vmatprep.mubr.f32.mxu0 0.0
    %117 = vmatmul.mubr.f32.gmra.mrb[0].mxu0 %v45
    %v118 = vpop.f32.mrb[0].mxu0
    %v119 = vadd.f32 %v38, %v118
    %v120 = vpop.f32.mrb[0].mxu0
    %121 = vdwg.mxu0
    %v122 = vmax.f32 %v114, 0.0
    %v123 = vmax.f32 %v119, 0.0
    %v124 = vld [vmem:[%s3] sm:$0xff]
    %v125 = vld [vmem:[%s3 + $0x8] sm:$0xff]
    %v126 = vld [vmem:[%s4] sm:$0x1]
    %v128 = vlaneseq
    %v129 = vshrl.u32 %v128, 7
    %v130 = vsub.s32 0, %v129
    %v131 = vrot.slane %v126, %v130
    %vm133 = vcmask 130048
    %v135 = vsel %vm133, %v122, 0
    %v138 = vsel %vm133, %v123, 0
    %140 = vmatprep.subr.mxu0 0.0
    %141 = vmatpush1.msra.mxu0 %v124
    %142 = vmatprep.subr.mxu0 0.0
    %143 = vmatpush1.msra.mxu0 %v125
    %144 = vmatprep.subr.mxu0 0.0
    %145 = vmatpush1.msra.mxu0 0.0
    %146 = vmatprep.subr.mxu0 0.0
    %147 = vmatpush1.msra.mxu0 0.0
    %148 = vmatprep.subr.mxu0 0.0
    %149 = vmatpush1.msra.mxu0 0.0
    %150 = vmatprep.subr.mxu0 0.0
    %151 = vmatpush1.msra.mxu0 0.0
    %152 = vmatprep.subr.mxu0 0.0
    %153 = vmatpush1.msra.mxu0 0.0
    %154 = vmatprep.subr.mxu0 0.0
    %155 = vmatpush1.msra.mxu0 0.0
    %156 = vmatprep.subr.mxu0 0.0
    %157 = vmatpush1.msra.mxu0 0.0
    %158 = vmatprep.subr.mxu0 0.0
    %159 = vmatpush1.msra.mxu0 0.0
    %160 = vmatprep.subr.mxu0 0.0
    %161 = vmatpush1.msra.mxu0 0.0
    %162 = vmatprep.subr.mxu0 0.0
    %163 = vmatpush1.msra.mxu0 0.0
    %164 = vmatprep.subr.mxu0 0.0
    %165 = vmatpush1.msra.mxu0 0.0
    %166 = vmatprep.subr.mxu0 0.0
    %167 = vmatpush1.msra.mxu0 0.0
    %168 = vmatprep.subr.mxu0 0.0
    %169 = vmatpush1.msra.mxu0 0.0
    %170 = vmatprep.subr.mxu0 0.0
    %171 = vmatpush1.msra.mxu0 0.0
    %172 = vmatprep.subr.mxu0 0.0
    %173 = vmatpush1.msra.mxu0 0.0
    %174 = vmatprep.subr.mxu0 0.0
    %175 = vmatpush1.msra.mxu0 0.0
    %176 = vmatprep.subr.mxu0 0.0
    %177 = vmatpush1.msra.mxu0 0.0
    %178 = vmatprep.subr.mxu0 0.0
    %179 = vmatpush1.msra.mxu0 0.0
    %180 = vmatprep.subr.mxu0 0.0
    %181 = vmatpush1.msra.mxu0 0.0
    %182 = vmatprep.subr.mxu0 0.0
    %183 = vmatpush1.msra.mxu0 0.0
    %184 = vmatprep.subr.mxu0 0.0
    %185 = vmatpush1.msra.mxu0 0.0
    %186 = vmatprep.subr.mxu0 0.0
    %187 = vmatpush1.msra.mxu0 0.0
    %188 = vmatprep.subr.mxu0 0.0
    %189 = vmatpush1.msra.mxu0 0.0
    %190 = vmatprep.subr.mxu0 0.0
    %191 = vmatpush1.msra.mxu0 0.0
    %192 = vmatprep.subr.mxu0 0.0
    %193 = vmatpush1.msra.mxu0 0.0
    %194 = vmatprep.subr.mxu0 0.0
    %195 = vmatpush1.msra.mxu0 0.0
    %196 = vmatprep.subr.mxu0 0.0
    %197 = vmatpush1.msra.mxu0 0.0
    %198 = vmatprep.subr.mxu0 0.0
    %199 = vmatpush1.msra.mxu0 0.0
    %200 = vmatprep.subr.mxu0 0.0
    %201 = vmatpush1.msra.mxu0 0.0
    %202 = vmatprep.subr.mxu0 0.0
    %203 = vmatpush1.msra.mxu0 0.0
    %204 = vmatprep.mubr.f32.mxu0 0.0
    %205 = vmatmul.mubr.f32.gmra.mrb[0].mxu0 %v135
    %v206 = vpop.f32.mrb[0].mxu0
    %v207 = vadd.f32 %v131, %v206
    %v208 = vpop.f32.mrb[0].mxu0
    %209 = vmatprep.mubr.f32.mxu0 0.0
    %210 = vmatmul.mubr.f32.gmra.mrb[0].mxu0 %v138
    %v211 = vpop.f32.mrb[0].mxu0
    %v212 = vadd.f32 %v131, %v211
    %v213 = vpop.f32.mrb[0].mxu0
    %214 = vdwg.mxu0
    %v215 = vmax.f32 %v207, 0.0
    %v216 = vmax.f32 %v212, 0.0
    %v217 = vld [vmem:[%s5] sm:$0xff]
    %v218 = vld [vmem:[%s6] sm:$0x1]
    %v220 = vlaneseq
    %v221 = vshrl.u32 %v220, 7
    %v222 = vsub.s32 0, %v221
    %v223 = vrot.slane %v218, %v222
    %vm225 = vcmask 64512
    %v227 = vsel %vm225, %v215, 0
    %v230 = vsel %vm225, %v216, 0
    %232 = vmatprep.subr.mxu0 0.0
    %233 = vmatpush1.msra.mxu0 %v217
    %234 = vmatprep.subr.mxu0 0.0
    %235 = vmatpush1.msra.mxu0 0.0
    %236 = vmatprep.subr.mxu0 0.0
    %237 = vmatpush1.msra.mxu0 0.0
    %238 = vmatprep.subr.mxu0 0.0
    %239 = vmatpush1.msra.mxu0 0.0
    %240 = vmatprep.subr.mxu0 0.0
    %241 = vmatpush1.msra.mxu0 0.0
    %242 = vmatprep.subr.mxu0 0.0
    %243 = vmatpush1.msra.mxu0 0.0
    %244 = vmatprep.subr.mxu0 0.0
    %245 = vmatpush1.msra.mxu0 0.0
    %246 = vmatprep.subr.mxu0 0.0
    %247 = vmatpush1.msra.mxu0 0.0
    %248 = vmatprep.subr.mxu0 0.0
    %249 = vmatpush1.msra.mxu0 0.0
    %250 = vmatprep.subr.mxu0 0.0
    %251 = vmatpush1.msra.mxu0 0.0
    %252 = vmatprep.subr.mxu0 0.0
    %253 = vmatpush1.msra.mxu0 0.0
    %254 = vmatprep.subr.mxu0 0.0
    %255 = vmatpush1.msra.mxu0 0.0
    %256 = vmatprep.subr.mxu0 0.0
    %257 = vmatpush1.msra.mxu0 0.0
    %258 = vmatprep.subr.mxu0 0.0
    %259 = vmatpush1.msra.mxu0 0.0
    %260 = vmatprep.subr.mxu0 0.0
    %261 = vmatpush1.msra.mxu0 0.0
    %262 = vmatprep.subr.mxu0 0.0
    %263 = vmatpush1.msra.mxu0 0.0
    %264 = vmatprep.subr.mxu0 0.0
    %265 = vmatpush1.msra.mxu0 0.0
    %266 = vmatprep.subr.mxu0 0.0
    %267 = vmatpush1.msra.mxu0 0.0
    %268 = vmatprep.subr.mxu0 0.0
    %269 = vmatpush1.msra.mxu0 0.0
    %270 = vmatprep.subr.mxu0 0.0
    %271 = vmatpush1.msra.mxu0 0.0
    %272 = vmatprep.subr.mxu0 0.0
    %273 = vmatpush1.msra.mxu0 0.0
    %274 = vmatprep.subr.mxu0 0.0
    %275 = vmatpush1.msra.mxu0 0.0
    %276 = vmatprep.subr.mxu0 0.0
    %277 = vmatpush1.msra.mxu0 0.0
    %278 = vmatprep.subr.mxu0 0.0
    %279 = vmatpush1.msra.mxu0 0.0
    %280 = vmatprep.subr.mxu0 0.0
    %281 = vmatpush1.msra.mxu0 0.0
    %282 = vmatprep.subr.mxu0 0.0
    %283 = vmatpush1.msra.mxu0 0.0
    %284 = vmatprep.subr.mxu0 0.0
    %285 = vmatpush1.msra.mxu0 0.0
    %286 = vmatprep.subr.mxu0 0.0
    %287 = vmatpush1.msra.mxu0 0.0
    %288 = vmatprep.subr.mxu0 0.0
    %289 = vmatpush1.msra.mxu0 0.0
    %290 = vmatprep.subr.mxu0 0.0
    %291 = vmatpush1.msra.mxu0 0.0
    %292 = vmatprep.subr.mxu0 0.0
    %293 = vmatpush1.msra.mxu0 0.0
    %294 = vmatprep.subr.mxu0 0.0
    %295 = vmatpush1.msra.mxu0 0.0
    %296 = vmatprep.mubr.f32.mxu0 0.0
    %297 = vmatmul.mubr.f32.gmra.mrb[0].mxu0 %v227
    %v298 = vpop.f32.mrb[0].mxu0
    %v299 = vadd.f32 %v223, %v298
    %v300 = vpop.f32.mrb[0].mxu0
    %301 = vmatprep.mubr.f32.mxu0 0.0
    %302 = vmatmul.mubr.f32.gmra.mrb[0].mxu0 %v230
    %v303 = vpop.f32.mrb[0].mxu0
    %v304 = vadd.f32 %v223, %v303
    %v305 = vpop.f32.mrb[0].mxu0
    %306 = vdwg.mxu0
    %307 = vst [vmem:[#allocation2] sm:$0xff] %v299
    %308 = vst [vmem:[#allocation2 + $0x8] sm:$0xff] %v304
    // Predicated region
    $region30: #{tpu_custom_call.1} parent=1 // pred_check
      _
    $region31: #{tpu_custom_call.1} parent=1 // pred_check_branch
      %310 = sbr.rel (0) target = $region33
    $region32: #{tpu_custom_call.1} parent=1 // pred_region
      %s312 = ssub.s32 256, 256
      %313 = vsyncadd [#allocation3], %s312
      %s314 = sshll.u32 [#allocation2], 4
      %s315 = int_to_ptr.vmem [resolvable:$true] %s314
      %320 = dma.vmem_to_hbm [thread:$0]  %s315, 256, %s7, [#allocation3], 128, 128, 8
    $region33: #{tpu_custom_call.1} parent=1 // pred_fallthru
      _
    // Predicated region
    $region34: #{tpu_custom_call.1} parent=1 // pred_check
      _
    $region35: #{tpu_custom_call.1} parent=1 // pred_check_branch
      %322 = sbr.rel (0) target = $region37
    $region36: #{tpu_custom_call.1} parent=1 // pred_region
      %323 = dma.done [#allocation3], 256
    $region37: #{tpu_custom_call.1} parent=1 // pred_fallthru
      _
    %324 = vsyncpa [#allocation3], 1

</llo_original>
